<compile_context>
chip_gen: v7x
topology: tpu7x:2x2x1
jax: 0.10.0
libtpu: 0.0.40
codegen_flags: <defaults>
</compile_context>

<pallas_src>
import jax
import jax.numpy as jnp
from jax import lax
from jax.experimental import pallas as pl
from jax.experimental.pallas import tpu as pltpu

_LANES = 128


def _cdiv(a, b):
    return -(-a // b)


def _round_up(a, b):
    return _cdiv(a, b) * b


def _make_kernel(tile_m, rows, bpc, needs_mask):
    """Kernel computing per-core partial SSE / SAE over row tiles."""

    def kernel(p_ref, t_ref, sse_ref, sae_ref, acc_sq, acc_abs):
        c = pl.program_id(0)           # core-split index ("parallel")
        i = pl.program_id(1)           # row-block index ("arbitrary" reduction)
        ni = pl.num_programs(1)

        @pl.when(i == 0)
        def _():
            acc_sq[...] = jnp.zeros_like(acc_sq)
            acc_abs[...] = jnp.zeros_like(acc_abs)

        diff = p_ref[...].astype(jnp.float32) - t_ref[...].astype(jnp.float32)

        if needs_mask:  # static: only traced in for non-divisible shapes
            row0 = (c * bpc + i) * tile_m
            ridx = lax.broadcasted_iota(jnp.int32, (tile_m, 1), 0) + row0
            diff = jnp.where(ridx < rows, diff, 0.0)

        # Per step: sublane reduce only; per-lane partials live in VMEM scratch.
        acc_sq[...] += jnp.sum(diff * diff, axis=0, keepdims=True)
        acc_abs[...] += jnp.sum(jnp.abs(diff), axis=0, keepdims=True)

        @pl.when(i == ni - 1)
        def _():
            s_sq = jnp.sum(acc_sq[...], axis=-1, keepdims=True)    # (1, 1)
            s_ab = jnp.sum(acc_abs[...], axis=-1, keepdims=True)   # (1, 1)
            sse_ref[...] = jnp.broadcast_to(s_sq, sse_ref.shape)
            sae_ref[...] = jnp.broadcast_to(s_ab, sae_ref.shape)

    return kernel


def _loss_sums(pred, tgt, *, target_block_bytes=4 * 1024 * 1024):
    """Return (sum of squared error, sum of absolute error) via one Pallas pass."""
    assert pred.shape == tgt.shape, (pred.shape, tgt.shape)
    total = int(pred.size)
    dtype_bytes = jnp.dtype(pred.dtype).itemsize

    # ---- lane-dense width: multiple of 128 dividing total, preferring rows >= 8
    W = 0
    for cand in (4096, 2048, 1024, 512, 256, 128):
        if total % cand == 0:
            W = cand
            if total // cand >= 8:
                break

    p_flat = pred.reshape(-1)
    t_flat = tgt.reshape(-1)
    if W == 0:
        # total not a multiple of 128: zero-pad both flat tails identically.
        # (Padded diff == 0, contributes nothing; costs one extra copy — rare.)
        W = _LANES
        padded = _round_up(total, W)
        p_flat = jnp.pad(p_flat, (0, padded - total))
        t_flat = jnp.pad(t_flat, (0, padded - total))

    flat_len = int(p_flat.size)
    rows = flat_len // W
    p2 = p_flat.reshape(rows, W)
    t2 = t_flat.reshape(rows, W)

    # ---- byte-budgeted row tile (multiple of 16 -> valid for f32 and bf16)
    tm = max(16, (target_block_bytes // (W * dtype_bytes)) // 16 * 16)
    tile_m = rows if tm >= rows else tm

    num_blocks = _cdiv(rows, tile_m)
    n_splits = 2 if num_blocks >= 2 else 1          # 2-core split (v7x); loop elsewhere
    bpc = _cdiv(num_blocks, n_splits)               # row blocks per core
    needs_mask = (rows % tile_m != 0) or (num_blocks % n_splits != 0)

    kernel = _make_kernel(tile_m, rows, bpc, needs_mask)

    # Clamp so an overhanging block never DMAs fully out of bounds; the row
    # mask zeroes its contribution.
    def in_map(c, i):
        return (jnp.minimum(c * bpc + i, num_blocks - 1), 0)

    def out_map(c, i):
        return (0, c)

    block_bytes = tile_m * W * dtype_bytes
    # 2 inputs x 2 pipeline buffers + scratch/outputs + slack; explicit so the
    # scoped-VMEM default (16 MiB v5e / 32 MiB v6e,v7x) is never the limiter.
    vmem_limit = int(min(48 * 2**20, max(16 * 2**20, 4 * block_bytes + 4 * 2**20)))

    cost = pl.CostEstimate(
        flops=4 * total,
        transcendentals=0,
        bytes_accessed=2 * total * dtype_bytes + 2 * n_splits * _LANES * 4,
    )

    sse_p, sae_p = pl.pallas_call(
        kernel,
        out_shape=(
            jax.ShapeDtypeStruct((1, n_splits * _LANES), jnp.float32),
            jax.ShapeDtypeStruct((1, n_splits * _LANES), jnp.float32),
        ),
        grid_spec=pltpu.PrefetchScalarGridSpec(
            num_scalar_prefetch=0,
            grid=(n_splits, bpc),
            in_specs=[
                pl.BlockSpec((tile_m, W), in_map),
                pl.BlockSpec((tile_m, W), in_map),
            ],
            out_specs=(
                pl.BlockSpec((1, _LANES), out_map),
                pl.BlockSpec((1, _LANES), out_map),
            ),
            scratch_shapes=[
                pltpu.VMEM((1, W), jnp.float32),
                pltpu.VMEM((1, W), jnp.float32),
            ],
        ),
        compiler_params=pltpu.CompilerParams(
            dimension_semantics=("parallel", "arbitrary"),
            vmem_limit_bytes=vmem_limit,
        ),
        cost_estimate=cost,
    )(p2, t2)

    # Per-core partials live at lane offset c*128; sum them in JAX.
    sse = jnp.sum(sse_p.reshape(n_splits, _LANES)[:, 0])
    sae = jnp.sum(sae_p.reshape(n_splits, _LANES)[:, 0])
    return sse, sae


class ModeLoss:
    """JAX/Pallas port of ModeLoss(train=Loss(MSELoss()), eval=Loss(L1Loss()))."""

    def __init__(self):
        self.training = True
        self._train_weight = 1.0   # Loss(..., weight=1.0)
        self._eval_weight = 1.0

    def train(self):
        self.training = True
        return self

    def eval(self):
        self.training = False
        return self

    def __call__(self, net_out: dict, batch: dict, **kw) -> dict:
        pred = net_out["prediction"]
        tgt = batch["target"]
        n_elem = float(pred.size)
        sse, sae = _loss_sums(pred, tgt, **kw)
        if self.training:
            loss = self._train_weight * (sse / n_elem)   # MSELoss (mean)
        else:
            loss = self._eval_weight * (sae / n_elem)    # L1Loss (mean)
        return {"loss": loss}


def _check(pred, tgt, **kw):
    crit = ModeLoss()
    mse = crit.train()(net_out={"prediction": pred}, batch={"target": tgt}, **kw)["loss"]
    mae = crit.eval()(net_out={"prediction": pred}, batch={"target": tgt}, **kw)["loss"]
    jax.block_until_ready((mse, mae))
    p32 = pred.astype(jnp.float32)
    t32 = tgt.astype(jnp.float32)
    ref_mse = jnp.mean((p32 - t32) ** 2)
    ref_mae = jnp.mean(jnp.abs(p32 - t32))
    ok = bool(
        jnp.allclose(mse, ref_mse, rtol=1e-5, atol=1e-6)
        and jnp.allclose(mae, ref_mae, rtol=1e-5, atol=1e-6)
    )
    return ok, (mse, ref_mse, mae, ref_mae)


if __name__ == "__main__":
    key = jax.random.PRNGKey(0)
    k1, k2, k3, k4, k5, k6, k7, k8 = jax.random.split(key, 8)

    all_ok = True

    # 1) Exact docstring example: zeros vs 2*ones, shape (2, 4).
    z = jnp.zeros((2, 4), jnp.float32)
    o = 2.0 * jnp.ones((2, 4), jnp.float32)
    doc_train = ModeLoss().train()(net_out={"prediction": z}, batch={"target": o})["loss"]
    doc_eval = ModeLoss().eval()(net_out={"prediction": z}, batch={"target": o})["loss"]
    jax.block_until_ready((doc_train, doc_eval))
    all_ok &= bool(jnp.allclose(doc_train, 4.0, rtol=1e-6))
    all_ok &= bool(jnp.allclose(doc_eval, 2.0, rtol=1e-6))

    # 2) Small 4-D prediction/target, f32.
    p = jax.random.normal(k1, (2, 4, 16, 16), jnp.float32)
    t = jax.random.normal(k2, (2, 4, 16, 16), jnp.float32)
    ok, _ = _check(p, t)
    all_ok &= ok

    # 3) Odd element count -> zero-pad path.
    p = jax.random.normal(k3, (3, 5, 7), jnp.float32)
    t = jax.random.normal(k4, (3, 5, 7), jnp.float32)
    ok, _ = _check(p, t)
    all_ok &= ok

    # 4) Force multi-block + 2-way core split + edge-block masking with a tiny
    #    block budget (exercises the clamped index_map and the row mask).
    p = jax.random.normal(k5, (37, 300), jnp.float32)
    t = jax.random.normal(k6, (37, 300), jnp.float32)
    ok, _ = _check(p, t, target_block_bytes=16 * 1024)
    all_ok &= ok

    # 5) bf16 inputs stay bf16 in HBM; upcast happens in-kernel.
    p = jax.random.normal(k7, (32, 2048), jnp.float32).astype(jnp.bfloat16)
    t = jax.random.normal(k8, (32, 2048), jnp.float32).astype(jnp.bfloat16)
    ok, _ = _check(p, t)
    all_ok &= ok

    if all_ok:
        print("KERNEL_OK")
    else:
        raise SystemExit("mismatch between Pallas ModeLoss and JAX reference")
</pallas_src>

<mosaic_0001>
module attributes {stable_mosaic.version = 11 : i64} {
  func.func @kernel(%arg0: i32, %arg1: i32, %arg2: memref<1x128xf32, #tpu.memory_space<vmem>>, %arg3: memref<1x128xf32, #tpu.memory_space<vmem>>, %arg4: memref<1x128xf32, #tpu.memory_space<vmem>>, %arg5: memref<1x128xf32, #tpu.memory_space<vmem>>, %arg6: memref<1x128xf32, #tpu.memory_space<vmem>>, %arg7: memref<1x128xf32, #tpu.memory_space<vmem>>) attributes {dimension_semantics = [#tpu.dimension_semantics<parallel>, #tpu.dimension_semantics<arbitrary>], iteration_bounds = array<i64: 1, 1>, scalar_prefetch = 0 : i64, scratch_operands = 2 : i64, tpu.core_type = #tpu.core_type<tc>, window_params = [{transform_indices = @transform_0, window_bounds = array<i64: 1, 128>}, {transform_indices = @transform_1, window_bounds = array<i64: 1, 128>}, {transform_indices = @transform_2, window_bounds = array<i64: 1, 128>}, {transform_indices = @transform_3, window_bounds = array<i64: 1, 128>}]} {
    %c0_i32 = arith.constant 0 : i32
    %0 = arith.cmpi eq, %arg1, %c0_i32 : i32
    %1 = arith.extui %0 : i1 to i32
    %c0_i32_0 = arith.constant 0 : i32
    %2 = arith.cmpi ne, %1, %c0_i32_0 : i32
    scf.if %2 {
      %cst_15 = arith.constant 0.000000e+00 : f32
      %21 = vector.broadcast %cst_15 : f32 to vector<1x128xf32>
      %c0_16 = arith.constant 0 : index
      %c0_17 = arith.constant 0 : index
      %22 = vector.load %arg6[%c0_16, %c0_17] : memref<1x128xf32, #tpu.memory_space<vmem>>, vector<1x128xf32>
      tpu.vector_store %arg6[%c0_16, %c0_17], %21 {strides = array<i32>} : memref<1x128xf32, #tpu.memory_space<vmem>>, vector<1x128xf32>,
      %cst_18 = arith.constant 0.000000e+00 : f32
      %23 = vector.broadcast %cst_18 : f32 to vector<1x128xf32>
      %c0_19 = arith.constant 0 : index
      %c0_20 = arith.constant 0 : index
      %24 = vector.load %arg7[%c0_19, %c0_20] : memref<1x128xf32, #tpu.memory_space<vmem>>, vector<1x128xf32>
      tpu.vector_store %arg7[%c0_19, %c0_20], %23 {strides = array<i32>} : memref<1x128xf32, #tpu.memory_space<vmem>>, vector<1x128xf32>,
    } else {
    }
    %c0 = arith.constant 0 : index
    %c0_1 = arith.constant 0 : index
    %3 = vector.load %arg2[%c0, %c0_1] : memref<1x128xf32, #tpu.memory_space<vmem>>, vector<1x128xf32>
    %c0_2 = arith.constant 0 : index
    %c0_3 = arith.constant 0 : index
    %4 = vector.load %arg3[%c0_2, %c0_3] : memref<1x128xf32, #tpu.memory_space<vmem>>, vector<1x128xf32>
    %5 = arith.subf %3, %4 : vector<1x128xf32>
    %c0_4 = arith.constant 0 : index
    %c0_5 = arith.constant 0 : index
    %6 = vector.load %arg6[%c0_4, %c0_5] : memref<1x128xf32, #tpu.memory_space<vmem>>, vector<1x128xf32>
    %7 = arith.mulf %5, %5 : vector<1x128xf32>
    %cst = arith.constant dense<0.000000e+00> : vector<128xf32>
    %8 = vector.multi_reduction <add>, %7, %cst [0] : vector<1x128xf32> to vector<128xf32>
    %9 = vector.shape_cast %8 : vector<128xf32> to vector<1x128xf32>
    %10 = arith.addf %6, %9 : vector<1x128xf32>
    %c0_6 = arith.constant 0 : index
    %c0_7 = arith.constant 0 : index
    %11 = vector.load %arg6[%c0_6, %c0_7] : memref<1x128xf32, #tpu.memory_space<vmem>>, vector<1x128xf32>
    tpu.vector_store %arg6[%c0_6, %c0_7], %10 {strides = array<i32>} : memref<1x128xf32, #tpu.memory_space<vmem>>, vector<1x128xf32>,
    %c0_8 = arith.constant 0 : index
    %c0_9 = arith.constant 0 : index
    %12 = vector.load %arg7[%c0_8, %c0_9] : memref<1x128xf32, #tpu.memory_space<vmem>>, vector<1x128xf32>
    %13 = math.absf %5 : vector<1x128xf32>
    %cst_10 = arith.constant dense<0.000000e+00> : vector<128xf32>
    %14 = vector.multi_reduction <add>, %13, %cst_10 [0] : vector<1x128xf32> to vector<128xf32>
    %15 = vector.shape_cast %14 : vector<128xf32> to vector<1x128xf32>
    %16 = arith.addf %12, %15 : vector<1x128xf32>
    %c0_11 = arith.constant 0 : index
    %c0_12 = arith.constant 0 : index
    %17 = vector.load %arg7[%c0_11, %c0_12] : memref<1x128xf32, #tpu.memory_space<vmem>>, vector<1x128xf32>
    tpu.vector_store %arg7[%c0_11, %c0_12], %16 {strides = array<i32>} : memref<1x128xf32, #tpu.memory_space<vmem>>, vector<1x128xf32>,
    %c0_i32_13 = arith.constant 0 : i32
    %18 = arith.cmpi eq, %arg1, %c0_i32_13 : i32
    %19 = arith.extui %18 : i1 to i32
    %c0_i32_14 = arith.constant 0 : i32
    %20 = arith.cmpi ne, %19, %c0_i32_14 : i32
    scf.if %20 {
      %c0_15 = arith.constant 0 : index
      %c0_16 = arith.constant 0 : index
      %21 = vector.load %arg6[%c0_15, %c0_16] : memref<1x128xf32, #tpu.memory_space<vmem>>, vector<1x128xf32>
      %cst_17 = arith.constant dense<0.000000e+00> : vector<1xf32>
      %22 = vector.multi_reduction <add>, %21, %cst_17 [1] : vector<1x128xf32> to vector<1xf32>
      %23 = vector.shape_cast %22 : vector<1xf32> to vector<1x1xf32>
      %c0_18 = arith.constant 0 : index
      %c0_19 = arith.constant 0 : index
      %24 = vector.load %arg7[%c0_18, %c0_19] : memref<1x128xf32, #tpu.memory_space<vmem>>, vector<1x128xf32>
      %cst_20 = arith.constant dense<0.000000e+00> : vector<1xf32>
      %25 = vector.multi_reduction <add>, %24, %cst_20 [1] : vector<1x128xf32> to vector<1xf32>
      %26 = vector.shape_cast %25 : vector<1xf32> to vector<1x1xf32>
      %27 = vector.shape_cast %23 : vector<1x1xf32> to vector<1x1xf32>
      %28 = vector.broadcast %27 : vector<1x1xf32> to vector<1x128xf32>
      %c0_21 = arith.constant 0 : index
      %c0_22 = arith.constant 0 : index
      %29 = vector.load %arg4[%c0_21, %c0_22] : memref<1x128xf32, #tpu.memory_space<vmem>>, vector<1x128xf32>
      tpu.vector_store %arg4[%c0_21, %c0_22], %28 {strides = array<i32>} : memref<1x128xf32, #tpu.memory_space<vmem>>, vector<1x128xf32>,
      %30 = vector.shape_cast %26 : vector<1x1xf32> to vector<1x1xf32>
      %31 = vector.broadcast %30 : vector<1x1xf32> to vector<1x128xf32>
      %c0_23 = arith.constant 0 : index
      %c0_24 = arith.constant 0 : index
      %32 = vector.load %arg5[%c0_23, %c0_24] : memref<1x128xf32, #tpu.memory_space<vmem>>, vector<1x128xf32>
      tpu.vector_store %arg5[%c0_23, %c0_24], %31 {strides = array<i32>} : memref<1x128xf32, #tpu.memory_space<vmem>>, vector<1x128xf32>,
    } else {
    }
    return
  }
  func.func @transform_0(%arg0: i32, %arg1: i32) -> (i32, i32) {
    %c1_i32 = arith.constant 1 : i32
    %0 = arith.muli %arg0, %c1_i32 : i32
    %1 = arith.addi %0, %arg1 : i32
    %c0_i32 = arith.constant 0 : i32
    %2 = arith.minsi %1, %c0_i32 : i32
    %c0_i32_0 = arith.constant 0 : i32
    %c0_i32_1 = arith.constant 0 : i32
    return %2, %c0_i32_0 : i32, i32
  }
  func.func @transform_1(%arg0: i32, %arg1: i32) -> (i32, i32) {
    %c1_i32 = arith.constant 1 : i32
    %0 = arith.muli %arg0, %c1_i32 : i32
    %1 = arith.addi %0, %arg1 : i32
    %c0_i32 = arith.constant 0 : i32
    %2 = arith.minsi %1, %c0_i32 : i32
    %c0_i32_0 = arith.constant 0 : i32
    %c0_i32_1 = arith.constant 0 : i32
    return %2, %c0_i32_0 : i32, i32
  }
  func.func @transform_2(%arg0: i32, %arg1: i32) -> (i32, i32) {
    %c0_i32 = arith.constant 0 : i32
    %c0_i32_0 = arith.constant 0 : i32
    return %c0_i32, %arg0 : i32, i32
  }
  func.func @transform_3(%arg0: i32, %arg1: i32) -> (i32, i32) {
    %c0_i32 = arith.constant 0 : i32
    %c0_i32_0 = arith.constant 0 : i32
    return %c0_i32, %arg0 : i32, i32
  }
}

</mosaic_0001>

<llo_original>
// kernel: tpu_custom_call.1
$region0: #{tpu_custom_call.1}
  #allocation0 [shape = 'u32[]', space=smem, size = 0x4, offset = 0x4, fixed_abs, tag = 'smem constant byte address 0x4 - core index']
  #allocation1 [shape = 'u32[144,128]{1,0:T(1,128)}', space=vmem, size = 0x12000, scoped, tag = 'internal scratch']
  #allocation2 [shape = 'f32[1,128]{1,0:T(1,128)}', space=vmem, size = 0x200, scoped, tag = 'scratch operand']
  #allocation3 [shape = 'f32[1,128]{1,0:T(1,128)}', space=vmem, size = 0x200, scoped, tag = 'scratch operand']
  %s0 = inlined_call_operand.hbm [shape: f32[1,128], index: 0, kind: input, shape index: {}]
  %s1 = inlined_call_operand.vmem [shape: f32[1,128], index: 1, kind: input, shape index: {}]
  %s2 = inlined_call_operand.hbm [shape: f32[1,128], index: 2, kind: output, shape index: {0}]
  %s3 = inlined_call_operand.hbm [shape: f32[1,128], index: 3, kind: output, shape index: {1}]
  %4 = xla_tuple %s2, %s3
  %s5 = sld [smem:[#allocation0]]
  $region38: #{tpu_custom_call.1} parent=0
    _
  %s7 = ssub.s32 1, %s5
  %s8 = scalar_select 0, %s7, %s5
  $region1: #{tpu_custom_call.1} parent=0
    #allocation4 [shape = 'u8[512]{0}', space=vmem, size = 0x400, scoped, tag = 'input window, operand 0, single buffered']
    #allocation5 [shape = 's32[1]{0}', space=sflag, size = 0x4, scoped, tag = 'scoped memory for tpu_custom_call.1']
    #allocation6 [shape = 's32[1]{0}', space=sflag, size = 0x4, scoped, tag = 'scoped memory for tpu_custom_call.1']
    #allocation7 [shape = 'u8[512]{0}', space=vmem, size = 0x400, scoped, tag = 'output window, operand 0, single buffered']
    #allocation8 [shape = 'u8[512]{0}', space=vmem, size = 0x400, scoped, tag = 'output window, operand 1, single buffered']
    #allocation9 [shape = 's32[1]{0}', space=sflag, size = 0x4, scoped, tag = 'scoped memory for tpu_custom_call.1']
    %9 = vsyncpa [#allocation5], 0
    %10 = vsyncpa [#allocation6], 0
    %11 = vsyncpa [#allocation9], 0
    // Predicated region
    $region2: #{tpu_custom_call.1} parent=1 // pred_check
      _
    $region3: #{tpu_custom_call.1} parent=1 // pred_check_branch
      %13 = sbr.rel (0) target = $region5
    $region4: #{tpu_custom_call.1} parent=1 // pred_region
      %s14 = sadd.s32 0, 0
      %p15 = scmp.lt.s32.totalorder %s14, 0
      %s16 = scalar_select %p15, %s14, 0
      %s18 = ssub.s32 16, 16
      %19 = vsyncadd [#allocation5], %s18
      %s20 = smul.addr %s16, 16
      %s21 = scalar_lea.hbm %s0, %s20
      %s23 = sshll.u32 [#allocation4], 4
      %s24 = int_to_ptr.vmem [resolvable:$true] %s23
      %26 = dma.hbm_to_vmem [thread:$0]  %s21, 16, %s24, [#allocation5]
    $region5: #{tpu_custom_call.1} parent=1 // pred_fallthru
      _
    // Predicated region
    $region6: #{tpu_custom_call.1} parent=1 // pred_check
      _
    $region7: #{tpu_custom_call.1} parent=1 // pred_check_branch
      %28 = sbr.rel (0) target = $region9
    $region8: #{tpu_custom_call.1} parent=1 // pred_region
      %s29 = sadd.s32 0, 0
      %p30 = scmp.lt.s32.totalorder %s29, 0
      %s31 = scalar_select %p30, %s29, 0
      %p32 = scmp.lt.s32.totalorder %s31, 0
      %s33 = scalar_select %p32, %s31, 0
      %s34 = scalar_lea.vmem %s1, %s33
      %s35 = sadd.s32 0, 0
      %p36 = scmp.lt.s32.totalorder %s35, 0
      %s37 = scalar_select %p36, %s35, 0
    $region9: #{tpu_custom_call.1} parent=1 // pred_fallthru
      _
    // Predicated region
    $region10: #{tpu_custom_call.1} parent=1 // pred_check
      _
    $region11: #{tpu_custom_call.1} parent=1 // pred_check_branch
      %39 = sbr.rel (0) target = $region13
    $region12: #{tpu_custom_call.1} parent=1 // pred_region
      %40 = dma.done [#allocation5], 16
    $region13: #{tpu_custom_call.1} parent=1 // pred_fallthru
      _
    %s41 = sadd.s32 0, 0
    %p42 = scmp.lt.s32.totalorder %s41, 0
    %s43 = scalar_select %p42, %s41, 0
    %p44 = scmp.lt.s32.totalorder %s43, 0
    %s45 = scalar_select %p44, %s43, 0
    %s46 = scalar_lea.vmem %s1, %s45
    %s47 = sadd.s32 0, 0
    %p48 = scmp.lt.s32.totalorder %s47, 0
    %s49 = scalar_select %p48, %s47, 0
    %s50 = sadd.s32 0, 0
    %p51 = scmp.lt.s32.totalorder %s50, 0
    %s52 = scalar_select %p51, %s50, 0
    %p53 = scmp.lt.s32.totalorder %s52, 0
    %s54 = scalar_select %p53, %s52, 0
    %s55 = scalar_lea.vmem %s1, %s54
    %s56 = sadd.s32 0, 0
    %p57 = scmp.lt.s32.totalorder %s56, 0
    %s58 = scalar_select %p57, %s56, 0
    %p59 = scmp.eq.s32.totalorder 0, 0
    // Predicated region
    $region14: #{tpu_custom_call.1} parent=1 // pred_check
      %p60 = pneg %p59
    $region15: #{tpu_custom_call.1} parent=1 // pred_check_branch
      %62 = sbr.rel (%p60) target = $region17
    $region16: #{tpu_custom_call.1} parent=1 // pred_region
      %63 = vst [vmem:[#allocation2] sm:$0x1] 0.0
      %64 = vst [vmem:[#allocation3] sm:$0x1] 0.0
    $region17: #{tpu_custom_call.1} parent=1 // pred_fallthru
      _
    %v65 = vld [vmem:[#allocation4] sm:$0x1]
    %v66 = vld [vmem:[%s55] sm:$0x1]
    %v67 = vsub.f32 %v65, %v66
    %v68 = vld [vmem:[#allocation2] sm:$0x1]
    %v69 = vmul.f32 %v67, %v67
    %v70 = vadd.f32 %v69, 0.0
    %v71 = vadd.f32 %v68, %v70
    %72 = vst [vmem:[#allocation2] sm:$0x1] %v71
    %v73 = vld [vmem:[#allocation3] sm:$0x1]
    %v74 = vand.u32 2147483647, %v67
    %v75 = vadd.f32 %v74, 0.0
    %v76 = vadd.f32 %v73, %v75
    %77 = vst [vmem:[#allocation3] sm:$0x1] %v76
    // Predicated region
    $region18: #{tpu_custom_call.1} parent=1 // pred_check
      %p78 = pneg %p59
    $region19: #{tpu_custom_call.1} parent=1 // pred_check_branch
      %80 = sbr.rel (%p78) target = $region21
    $region20: #{tpu_custom_call.1} parent=1 // pred_region
      %v81 = vld [vmem:[#allocation2] sm:$0x1]
      %vm82 = vcmask 1040384
      %v83 = vsel %vm82, %v81, 0.0
      %84 = vadd.xlane.f32.xlu0 %v83
      %v85 = vpop.xlane.xlu0 %84
      %v86 = vld [vmem:[#allocation3] sm:$0x1]
      %v87 = vsel %vm82, %v86, 0.0
      %88 = vadd.xlane.f32.xlu0 %v87
      %v89 = vpop.xlane.xlu0 %88
      %90 = vst [vmem:[#allocation7] sm:$0x1] %v85
      %91 = vst [vmem:[#allocation8] sm:$0x1] %v89
    $region21: #{tpu_custom_call.1} parent=1 // pred_fallthru
      _
    // Predicated region
    $region22: #{tpu_custom_call.1} parent=1 // pred_check
      _
    $region23: #{tpu_custom_call.1} parent=1 // pred_check_branch
      %93 = sbr.rel (0) target = $region25
    $region24: #{tpu_custom_call.1} parent=1 // pred_region
      %s95 = ssub.s32 16, 16
      %96 = vsyncadd [#allocation6], %s95
      %s98 = sshll.u32 [#allocation7], 4
      %s99 = int_to_ptr.vmem [resolvable:$true] %s98
      %101 = dma.vmem_to_hbm [thread:$0]  %s99, 16, %s2, [#allocation6]
    $region25: #{tpu_custom_call.1} parent=1 // pred_fallthru
      _
    // Predicated region
    $region26: #{tpu_custom_call.1} parent=1 // pred_check
      _
    $region27: #{tpu_custom_call.1} parent=1 // pred_check_branch
      %103 = sbr.rel (0) target = $region29
    $region28: #{tpu_custom_call.1} parent=1 // pred_region
      %s105 = ssub.s32 16, 16
      %106 = vsyncadd [#allocation9], %s105
      %s108 = sshll.u32 [#allocation8], 4
      %s109 = int_to_ptr.vmem [resolvable:$true] %s108
      %111 = dma.vmem_to_hbm [thread:$0]  %s109, 16, %s3, [#allocation9]
    $region29: #{tpu_custom_call.1} parent=1 // pred_fallthru
      _
    // Predicated region
    $region30: #{tpu_custom_call.1} parent=1 // pred_check
      _
    $region31: #{tpu_custom_call.1} parent=1 // pred_check_branch
      %113 = sbr.rel (0) target = $region33
    $region32: #{tpu_custom_call.1} parent=1 // pred_region
      %114 = dma.done [#allocation6], 16
    $region33: #{tpu_custom_call.1} parent=1 // pred_fallthru
      _
    // Predicated region
    $region34: #{tpu_custom_call.1} parent=1 // pred_check
      _
    $region35: #{tpu_custom_call.1} parent=1 // pred_check_branch
      %116 = sbr.rel (0) target = $region37
    $region36: #{tpu_custom_call.1} parent=1 // pred_region
      %117 = dma.done [#allocation9], 16
    $region37: #{tpu_custom_call.1} parent=1 // pred_fallthru
      _
    %118 = vsyncpa [#allocation5], 1
    %119 = vsyncpa [#allocation6], 1
    %120 = vsyncpa [#allocation9], 1

</llo_original>
